<compile_context>
chip_gen: v7x
topology: tpu7x:2x2x1
jax: 0.10.0
libtpu: 0.0.40
codegen_flags: <defaults>
</compile_context>

<pallas_src>
import functools

import jax
import jax.numpy as jnp
from jax.experimental import pallas as pl
from jax.experimental.pallas import tpu as pltpu

LANES = 128
SUBLANES = 8


def _round_up(x, m):
    return ((x + m - 1) // m) * m


def _cdiv(a, b):
    return -(-a // b)


def _partial_sq_err_kernel(p_ref, t_ref, o_ref, acc_ref, *, m_rows):
    """Accumulate sum((pred-truth)^2) into an (8,128) partial-sum block.

    Grid: (parallel_chunk, k_tile).  `m_rows` is the static count of valid
    rows; rows at or beyond it (ragged last tile, or a clamped out-of-range
    tile from the parallel split) contribute 0.
    """
    k = pl.program_id(1)
    num_k = pl.num_programs(1)

    @pl.when(k == 0)
    def _():
        acc_ref[...] = jnp.zeros_like(acc_ref)

    # In-kernel cast keeps HBM traffic at the input's native width.
    d = p_ref[...].astype(jnp.float32) - t_ref[...].astype(jnp.float32)
    d2 = d * d

    rows = p_ref.shape[0]
    tile_idx = pl.program_id(0) * num_k + k          # logical (unclamped) tile
    start_row = tile_idx * rows

    def accumulate(x):
        # Pure vreg-wise VPU adds + unmasked (8,128) store; no per-step
        # cross-sublane (XLU) collapse, no masked 1-row store.
        acc_ref[...] += jnp.sum(
            x.reshape(rows // SUBLANES, SUBLANES, LANES), axis=0)

    is_full = start_row + rows <= m_rows

    @pl.when(is_full)
    def _():
        accumulate(d2)

    @pl.when(jnp.logical_not(is_full))
    def _():
        # Ragged last tile / fully out-of-range clamped tile: mask by global
        # row index so invalid rows contribute 0.
        row_ids = start_row + jax.lax.broadcasted_iota(
            jnp.int32, (rows, LANES), 0)
        accumulate(jnp.where(row_ids < m_rows, d2, 0.0))

    @pl.when(k == num_k - 1)
    def _():
        o_ref[...] = acc_ref[...]


def rmse_loss(pred, truth, *, rows_per_tile=4096, max_parallel=2):
    """RMSE = sqrt(mean((pred - truth)^2)); heavy work in a Pallas kernel."""
    assert pred.shape == truth.shape, "pred/truth must have the same shape"
    n_elems = int(pred.size)
    assert n_elems > 0, "empty input"

    p = pred.reshape(-1)
    t = truth.reshape(-1)

    # Lane-aligned prefix goes to the kernel; the <128-element ragged tail is
    # folded in with plain JAX (no full-tensor jnp.pad copy).
    n_main = (n_elems // LANES) * LANES
    m_rows = n_main // LANES

    if n_main < n_elems:
        td = p[n_main:].astype(jnp.float32) - t[n_main:].astype(jnp.float32)
        tail_sum = jnp.sum(td * td)
    else:
        tail_sum = jnp.float32(0.0)

    if m_rows == 0:
        # Fewer than 128 elements: nothing for the kernel to do.
        return jnp.sqrt(tail_sum / n_elems)

    # Tile height: multiple of the dtype's native sublane packing
    # (f32 -> 8, bf16 -> 16, int8/fp8 -> 32), no larger than needed or asked.
    min_itemsize = min(jnp.dtype(pred.dtype).itemsize,
                       jnp.dtype(truth.dtype).itemsize)
    packing = max(SUBLANES, 32 // max(1, min_itemsize))
    rows_per_tile = max(packing, min(int(rows_per_tile),
                                     _round_up(m_rows, packing)))
    rows_per_tile = _round_up(rows_per_tile, packing)

    total_tiles = _cdiv(m_rows, rows_per_tile)
    n_par = max(1, min(int(max_parallel), total_tiles))
    k_tiles = _cdiv(total_tiles, n_par)
    n_par = _cdiv(total_tiles, k_tiles)     # no empty parallel chunks

    if n_main == n_elems:
        p_main, t_main = p, t               # pure reshape, no copy
    else:
        p_main, t_main = p[:n_main], t[:n_main]
    p2 = p_main.reshape(m_rows, LANES)
    t2 = t_main.reshape(m_rows, LANES)

    def in_map(pi, ki):
        # Clamp so a fully out-of-range tile (ragged parallel split) re-reads
        # the last real tile; its contribution is masked out in the kernel.
        return (jnp.minimum(pi * k_tiles + ki, total_tiles - 1), 0)

    # Explicit VMEM budget with headroom: 2 pipeline buffers per input plus
    # elementwise temporaries; stays within v7x's tighter 64 MiB physical VMEM.
    in_bytes = (jnp.dtype(pred.dtype).itemsize
                + jnp.dtype(truth.dtype).itemsize)
    pipeline_bytes = 2 * rows_per_tile * LANES * in_bytes
    vmem_limit = int(min(64 * 2 ** 20, max(32 * 2 ** 20, 2 * pipeline_bytes)))

    kernel = functools.partial(_partial_sq_err_kernel, m_rows=m_rows)

    # TODO(synk): on v7x, verify the 2-TC split actually engages (profile both
    # cores); if not, switch the leading grid axis to pltpu.CORE_PARALLEL.
    partials = pl.pallas_call(
        kernel,
        out_shape=jax.ShapeDtypeStruct((n_par * SUBLANES, LANES), jnp.float32),
        grid_spec=pltpu.PrefetchScalarGridSpec(
            num_scalar_prefetch=0,
            grid=(n_par, k_tiles),
            in_specs=[
                pl.BlockSpec((rows_per_tile, LANES), in_map),
                pl.BlockSpec((rows_per_tile, LANES), in_map),
            ],
            out_specs=pl.BlockSpec((SUBLANES, LANES), lambda pi, ki: (pi, 0)),
            scratch_shapes=[pltpu.VMEM((SUBLANES, LANES), jnp.float32)],
        ),
        compiler_params=pltpu.CompilerParams(
            dimension_semantics=("parallel", "arbitrary"),
            vmem_limit_bytes=vmem_limit,
        ),
    )(p2, t2)

    # Trivial finalize: combine lane/sublane-wide partials + tail, mean, sqrt.
    return jnp.sqrt((jnp.sum(partials) + tail_sum) / n_elems)


if __name__ == "__main__":
    key = jax.random.PRNGKey(0)
    ks = jax.random.split(key, 8)

    def ref_rmse(a, b):
        return jnp.sqrt(jnp.mean(
            (a.astype(jnp.float32) - b.astype(jnp.float32)) ** 2))

    # Primary example (matches the module's expected small input).
    shape = (2, 4, 16, 16)
    pred = jax.random.normal(ks[0], shape, dtype=jnp.float32)
    truth = jax.random.normal(ks[1], shape, dtype=jnp.float32)
    out = jax.block_until_ready(rmse_loss(pred, truth))
    ref = ref_rmse(pred, truth)
    assert jnp.allclose(out, ref, rtol=1e-5, atol=1e-6), (out, ref)

    # Ragged size (not a multiple of 128): exercises the pad-free tail path.
    pred2 = jax.random.normal(ks[2], (5, 9, 33), dtype=jnp.float32)
    truth2 = jax.random.normal(ks[3], (5, 9, 33), dtype=jnp.float32)
    out2 = jax.block_until_ready(rmse_loss(pred2, truth2))
    ref2 = ref_rmse(pred2, truth2)
    assert jnp.allclose(out2, ref2, rtol=1e-5, atol=1e-6), (out2, ref2)

    # Multi-tile + parallel split + clamped/masked ragged last tile.
    pred3 = jax.random.normal(ks[4], (2, 1100, 128), dtype=jnp.float32)
    truth3 = jax.random.normal(ks[5], (2, 1100, 128), dtype=jnp.float32)
    out3 = jax.block_until_ready(rmse_loss(pred3, truth3, rows_per_tile=256))
    ref3 = ref_rmse(pred3, truth3)
    assert jnp.allclose(out3, ref3, rtol=1e-4, atol=1e-6), (out3, ref3)

    # bf16 inputs: native-dtype streaming + 16-row sublane packing.
    pred4 = jax.random.normal(ks[6], (4, 96, 128), dtype=jnp.bfloat16)
    truth4 = jax.random.normal(ks[7], (4, 96, 128), dtype=jnp.bfloat16)
    out4 = jax.block_until_ready(rmse_loss(pred4, truth4))
    ref4 = ref_rmse(pred4, truth4)
    assert jnp.allclose(out4, ref4, rtol=1e-3, atol=1e-4), (out4, ref4)

    # Tiny sub-128-element input: pure-JAX path (no kernel launch).
    pred5 = jax.random.normal(ks[0], (3, 7), dtype=jnp.float32)
    truth5 = jax.random.normal(ks[1], (3, 7), dtype=jnp.float32)
    out5 = jax.block_until_ready(rmse_loss(pred5, truth5))
    ref5 = ref_rmse(pred5, truth5)
    assert jnp.allclose(out5, ref5, rtol=1e-5, atol=1e-6), (out5, ref5)

    print("KERNEL_OK")
</pallas_src>

<mosaic_0001>
module attributes {stable_mosaic.version = 11 : i64} {
  func.func @_partial_sq_err_kernel(%arg0: i32, %arg1: i32, %arg2: memref<16x128xf32, #tpu.memory_space<vmem>>, %arg3: memref<16x128xf32, #tpu.memory_space<vmem>>, %arg4: memref<8x128xf32, #tpu.memory_space<vmem>>, %arg5: memref<8x128xf32, #tpu.memory_space<vmem>>) attributes {dimension_semantics = [#tpu.dimension_semantics<parallel>, #tpu.dimension_semantics<arbitrary>], iteration_bounds = array<i64: 1, 1>, scalar_prefetch = 0 : i64, scratch_operands = 1 : i64, tpu.core_type = #tpu.core_type<tc>, window_params = [{transform_indices = @transform_0, window_bounds = array<i64: 16, 128>}, {transform_indices = @transform_1, window_bounds = array<i64: 16, 128>}, {transform_indices = @transform_2, window_bounds = array<i64: 8, 128>}]} {
    %c0_i32 = arith.constant 0 : i32
    %0 = arith.cmpi eq, %arg1, %c0_i32 : i32
    %1 = arith.extui %0 : i1 to i32
    %c0_i32_0 = arith.constant 0 : i32
    %2 = arith.cmpi ne, %1, %c0_i32_0 : i32
    scf.if %2 {
      %cst = arith.constant 0.000000e+00 : f32
      %20 = vector.broadcast %cst : f32 to vector<8x128xf32>
      %c0_10 = arith.constant 0 : index
      %c0_11 = arith.constant 0 : index
      %21 = vector.load %arg5[%c0_10, %c0_11] : memref<8x128xf32, #tpu.memory_space<vmem>>, vector<8x128xf32>
      tpu.vector_store %arg5[%c0_10, %c0_11], %20 {strides = array<i32>} : memref<8x128xf32, #tpu.memory_space<vmem>>, vector<8x128xf32>,
    } else {
    }
    %c0 = arith.constant 0 : index
    %c0_1 = arith.constant 0 : index
    %3 = vector.load %arg2[%c0, %c0_1] : memref<16x128xf32, #tpu.memory_space<vmem>>, vector<16x128xf32>
    %c0_2 = arith.constant 0 : index
    %c0_3 = arith.constant 0 : index
    %4 = vector.load %arg3[%c0_2, %c0_3] : memref<16x128xf32, #tpu.memory_space<vmem>>, vector<16x128xf32>
    %5 = arith.subf %3, %4 : vector<16x128xf32>
    %6 = arith.mulf %5, %5 : vector<16x128xf32>
    %c1_i32 = arith.constant 1 : i32
    %7 = arith.muli %arg0, %c1_i32 : i32
    %8 = arith.addi %7, %arg1 : i32
    %c16_i32 = arith.constant 16 : i32
    %9 = arith.muli %8, %c16_i32 : i32
    %c16_i32_4 = arith.constant 16 : i32
    %10 = arith.addi %9, %c16_i32_4 : i32
    %c16_i32_5 = arith.constant 16 : i32
    %11 = arith.cmpi sle, %10, %c16_i32_5 : i32
    %12 = arith.extui %11 : i1 to i32
    %c0_i32_6 = arith.constant 0 : i32
    %13 = arith.cmpi ne, %12, %c0_i32_6 : i32
    scf.if %13 {
      %c0_10 = arith.constant 0 : index
      %c0_11 = arith.constant 0 : index
      %20 = vector.load %arg5[%c0_10, %c0_11] : memref<8x128xf32, #tpu.memory_space<vmem>>, vector<8x128xf32>
      %21 = vector.shape_cast %6 : vector<16x128xf32> to vector<2x8x128xf32>
      %cst = arith.constant dense<0.000000e+00> : vector<8x128xf32>
      %22 = vector.multi_reduction <add>, %21, %cst [0] : vector<2x8x128xf32> to vector<8x128xf32>
      %23 = arith.addf %20, %22 : vector<8x128xf32>
      %c0_12 = arith.constant 0 : index
      %c0_13 = arith.constant 0 : index
      %24 = vector.load %arg5[%c0_12, %c0_13] : memref<8x128xf32, #tpu.memory_space<vmem>>, vector<8x128xf32>
      tpu.vector_store %arg5[%c0_12, %c0_13], %23 {strides = array<i32>} : memref<8x128xf32, #tpu.memory_space<vmem>>, vector<8x128xf32>,
    } else {
    }
    %true = arith.constant true
    %14 = arith.xori %11, %true : i1
    %15 = arith.extui %14 : i1 to i32
    %c0_i32_7 = arith.constant 0 : i32
    %16 = arith.cmpi ne, %15, %c0_i32_7 : i32
    scf.if %16 {
      %20 = tpu.iota {dimensions = array<i32: 0>} : vector<16x128xi32>
      %21 = vector.broadcast %9 : i32 to vector<16x128xi32>
      %22 = arith.addi %21, %20 : vector<16x128xi32>
      %c16_i32_10 = arith.constant 16 : i32
      %23 = vector.broadcast %c16_i32_10 : i32 to vector<16x128xi32>
      %24 = arith.cmpi slt, %22, %23 : vector<16x128xi32>
      %cst = arith.constant 0.000000e+00 : f32
      %25 = vector.broadcast %cst : f32 to vector<16x128xf32>
      %26 = arith.select %24, %6, %25 : vector<16x128xi1>, vector<16x128xf32>
      %c0_11 = arith.constant 0 : index
      %c0_12 = arith.constant 0 : index
      %27 = vector.load %arg5[%c0_11, %c0_12] : memref<8x128xf32, #tpu.memory_space<vmem>>, vector<8x128xf32>
      %28 = vector.shape_cast %26 : vector<16x128xf32> to vector<2x8x128xf32>
      %cst_13 = arith.constant dense<0.000000e+00> : vector<8x128xf32>
      %29 = vector.multi_reduction <add>, %28, %cst_13 [0] : vector<2x8x128xf32> to vector<8x128xf32>
      %30 = arith.addf %27, %29 : vector<8x128xf32>
      %c0_14 = arith.constant 0 : index
      %c0_15 = arith.constant 0 : index
      %31 = vector.load %arg5[%c0_14, %c0_15] : memref<8x128xf32, #tpu.memory_space<vmem>>, vector<8x128xf32>
      tpu.vector_store %arg5[%c0_14, %c0_15], %30 {strides = array<i32>} : memref<8x128xf32, #tpu.memory_space<vmem>>, vector<8x128xf32>,
    } else {
    }
    %c0_i32_8 = arith.constant 0 : i32
    %17 = arith.cmpi eq, %arg1, %c0_i32_8 : i32
    %18 = arith.extui %17 : i1 to i32
    %c0_i32_9 = arith.constant 0 : i32
    %19 = arith.cmpi ne, %18, %c0_i32_9 : i32
    scf.if %19 {
      %c0_10 = arith.constant 0 : index
      %c0_11 = arith.constant 0 : index
      %20 = vector.load %arg5[%c0_10, %c0_11] : memref<8x128xf32, #tpu.memory_space<vmem>>, vector<8x128xf32>
      %c0_12 = arith.constant 0 : index
      %c0_13 = arith.constant 0 : index
      %21 = vector.load %arg4[%c0_12, %c0_13] : memref<8x128xf32, #tpu.memory_space<vmem>>, vector<8x128xf32>
      tpu.vector_store %arg4[%c0_12, %c0_13], %20 {strides = array<i32>} : memref<8x128xf32, #tpu.memory_space<vmem>>, vector<8x128xf32>,
    } else {
    }
    return
  }
  func.func @transform_0(%arg0: i32, %arg1: i32) -> (i32, i32) {
    %c1_i32 = arith.constant 1 : i32
    %0 = arith.muli %arg0, %c1_i32 : i32
    %1 = arith.addi %0, %arg1 : i32
    %c0_i32 = arith.constant 0 : i32
    %2 = arith.minsi %1, %c0_i32 : i32
    %c0_i32_0 = arith.constant 0 : i32
    %c0_i32_1 = arith.constant 0 : i32
    return %2, %c0_i32_0 : i32, i32
  }
  func.func @transform_1(%arg0: i32, %arg1: i32) -> (i32, i32) {
    %c1_i32 = arith.constant 1 : i32
    %0 = arith.muli %arg0, %c1_i32 : i32
    %1 = arith.addi %0, %arg1 : i32
    %c0_i32 = arith.constant 0 : i32
    %2 = arith.minsi %1, %c0_i32 : i32
    %c0_i32_0 = arith.constant 0 : i32
    %c0_i32_1 = arith.constant 0 : i32
    return %2, %c0_i32_0 : i32, i32
  }
  func.func @transform_2(%arg0: i32, %arg1: i32) -> (i32, i32) {
    %c0_i32 = arith.constant 0 : i32
    %c0_i32_0 = arith.constant 0 : i32
    return %arg0, %c0_i32 : i32, i32
  }
}

</mosaic_0001>

<llo_original>
// kernel: tpu_custom_call.1
$region0: #{tpu_custom_call.1}
  #allocation0 [shape = 'u32[]', space=smem, size = 0x4, offset = 0x4, fixed_abs, tag = 'smem constant byte address 0x4 - core index']
  #allocation1 [shape = 'u32[144,128]{1,0:T(1,128)}', space=vmem, size = 0x12000, scoped, tag = 'internal scratch']
  #allocation2 [shape = 'f32[8,128]{1,0:T(8,128)}', space=vmem, size = 0x1000, scoped, tag = 'scratch operand']
  %s0 = inlined_call_operand.hbm [shape: f32[16,128], index: 0, kind: input, shape index: {}]
  %s1 = inlined_call_operand.hbm [shape: f32[16,128], index: 1, kind: input, shape index: {}]
  %s2 = inlined_call_operand.hbm [shape: f32[8,128], index: 2, kind: output, shape index: {}]
  %s3 = sld [smem:[#allocation0]]
  $region42: #{tpu_custom_call.1} parent=0
    _
  %s5 = ssub.s32 1, %s3
  %s6 = scalar_select 0, %s5, %s3
  $region1: #{tpu_custom_call.1} parent=0
    #allocation3 [shape = 'u8[8192]{0}', space=vmem, size = 0x2000, scoped, tag = 'input window, operand 0, single buffered']
    #allocation4 [shape = 's32[1]{0}', space=sflag, size = 0x4, scoped, tag = 'scoped memory for tpu_custom_call.1']
    #allocation5 [shape = 's32[1]{0}', space=sflag, size = 0x4, scoped, tag = 'scoped memory for tpu_custom_call.1']
    #allocation6 [shape = 'u8[8192]{0}', space=vmem, size = 0x2000, scoped, tag = 'input window, operand 1, single buffered']
    #allocation7 [shape = 's32[1]{0}', space=sflag, size = 0x4, scoped, tag = 'scoped memory for tpu_custom_call.1']
    #allocation8 [shape = 'u8[4096]{0}', space=vmem, size = 0x1000, scoped, tag = 'output window, operand 0, single buffered']
    %7 = vsyncpa [#allocation4], 0
    %8 = vsyncpa [#allocation7], 0
    %9 = vsyncpa [#allocation5], 0
    // Predicated region
    $region2: #{tpu_custom_call.1} parent=1 // pred_check
      _
    $region3: #{tpu_custom_call.1} parent=1 // pred_check_branch
      %11 = sbr.rel (0) target = $region5
    $region4: #{tpu_custom_call.1} parent=1 // pred_region
      %s12 = sadd.s32 0, 0
      %p13 = scmp.lt.s32.totalorder %s12, 0
      %s14 = scalar_select %p13, %s12, 0
      %s15 = smul.u32 2, %s14
      %s17 = ssub.s32 256, 256
      %18 = vsyncadd [#allocation4], %s17
      %s19 = smul.addr %s15, 128
      %s20 = scalar_lea.hbm %s0, %s19
      %s21 = sshll.u32 [#allocation3], 4
      %s22 = int_to_ptr.vmem [resolvable:$true] %s21
      %27 = dma.hbm_to_vmem [thread:$0]  %s20, 256, %s22, [#allocation4], 128, 128, 8
    $region5: #{tpu_custom_call.1} parent=1 // pred_fallthru
      _
    // Predicated region
    $region6: #{tpu_custom_call.1} parent=1 // pred_check
      _
    $region7: #{tpu_custom_call.1} parent=1 // pred_check_branch
      %29 = sbr.rel (0) target = $region9
    $region8: #{tpu_custom_call.1} parent=1 // pred_region
      %s30 = sadd.s32 0, 0
      %p31 = scmp.lt.s32.totalorder %s30, 0
      %s32 = scalar_select %p31, %s30, 0
      %s33 = smul.u32 2, %s32
      %s35 = ssub.s32 256, 256
      %36 = vsyncadd [#allocation7], %s35
      %s37 = smul.addr %s33, 128
      %s38 = scalar_lea.hbm %s1, %s37
      %s39 = sshll.u32 [#allocation6], 4
      %s40 = int_to_ptr.vmem [resolvable:$true] %s39
      %45 = dma.hbm_to_vmem [thread:$0]  %s38, 256, %s40, [#allocation7], 128, 128, 8
    $region9: #{tpu_custom_call.1} parent=1 // pred_fallthru
      _
    // Predicated region
    $region10: #{tpu_custom_call.1} parent=1 // pred_check
      _
    $region11: #{tpu_custom_call.1} parent=1 // pred_check_branch
      %47 = sbr.rel (0) target = $region13
    $region12: #{tpu_custom_call.1} parent=1 // pred_region
      %48 = dma.done [#allocation4], 256
    $region13: #{tpu_custom_call.1} parent=1 // pred_fallthru
      _
    // Predicated region
    $region14: #{tpu_custom_call.1} parent=1 // pred_check
      _
    $region15: #{tpu_custom_call.1} parent=1 // pred_check_branch
      %50 = sbr.rel (0) target = $region17
    $region16: #{tpu_custom_call.1} parent=1 // pred_region
      %51 = dma.done [#allocation7], 256
    $region17: #{tpu_custom_call.1} parent=1 // pred_fallthru
      _
    %s52 = sadd.s32 0, 0
    %p53 = scmp.lt.s32.totalorder %s52, 0
    %s54 = scalar_select %p53, %s52, 0
    %s55 = smul.u32 2, %s54
    %s56 = sadd.s32 0, 0
    %p57 = scmp.lt.s32.totalorder %s56, 0
    %s58 = scalar_select %p57, %s56, 0
    %s59 = smul.u32 2, %s58
    %p60 = scmp.eq.s32.totalorder 0, 0
    // Predicated region
    $region18: #{tpu_custom_call.1} parent=1 // pred_check
      %p61 = pneg %p60
    $region19: #{tpu_custom_call.1} parent=1 // pred_check_branch
      %63 = sbr.rel (%p61) target = $region21
    $region20: #{tpu_custom_call.1} parent=1 // pred_region
      %64 = vst [vmem:[#allocation2] sm:$0xff] 0.0
    $region21: #{tpu_custom_call.1} parent=1 // pred_fallthru
      _
    %v65 = vld [vmem:[#allocation3] sm:$0xff]
    %v66 = vld [vmem:[#allocation3 + $0x8] sm:$0xff]
    %v67 = vld [vmem:[#allocation6] sm:$0xff]
    %v68 = vld [vmem:[#allocation6 + $0x8] sm:$0xff]
    %v69 = vsub.f32 %v65, %v67
    %v70 = vsub.f32 %v66, %v68
    %v71 = vmul.f32 %v69, %v69
    %v72 = vmul.f32 %v70, %v70
    %s73 = sadd.s32 0, 0
    %s74 = smul.u32 %s73, 16
    %s75 = sadd.s32 %s74, 16
    %p76 = scmp.le.s32.totalorder %s75, 16
    // Predicated region
    $region22: #{tpu_custom_call.1} parent=1 // pred_check
      %p77 = pneg %p76
    $region23: #{tpu_custom_call.1} parent=1 // pred_check_branch
      %79 = sbr.rel (%p77) target = $region25
    $region24: #{tpu_custom_call.1} parent=1 // pred_region
      %v80 = vld [vmem:[#allocation2] sm:$0xff]
      %v81 = vadd.f32 %v71, %v72
      %v82 = vadd.f32 %v80, %v81
      %83 = vst [vmem:[#allocation2] sm:$0xff] %v82
    $region25: #{tpu_custom_call.1} parent=1 // pred_fallthru
      _
    %p84 = scmp.gt.s32.totalorder %s75, 16
    // Predicated region
    $region26: #{tpu_custom_call.1} parent=1 // pred_check
      %p85 = pneg %p84
    $region27: #{tpu_custom_call.1} parent=1 // pred_check_branch
      %87 = sbr.rel (%p85) target = $region29
    $region28: #{tpu_custom_call.1} parent=1 // pred_region
      %v88 = vlaneseq
      %v89 = vshrl.u32 %v88, 7
      %v90 = vadd.s32 %v89, 8
      %v91 = vstv %s74
      %v92 = vadd.s32 %v91, %v89
      %v93 = vadd.s32 %v91, %v90
      %vm94 = vcmp.lt.s32.totalorder %v92, 16
      %vm95 = vcmp.lt.s32.totalorder %v93, 16
      %v96 = vsel %vm94, %v71, 0.0
      %v97 = vsel %vm95, %v72, 0.0
      %v98 = vld [vmem:[#allocation2] sm:$0xff]
      %v99 = vadd.f32 %v96, %v97
      %v100 = vadd.f32 %v98, %v99
      %101 = vst [vmem:[#allocation2] sm:$0xff] %v100
    $region29: #{tpu_custom_call.1} parent=1 // pred_fallthru
      _
    // Predicated region
    $region30: #{tpu_custom_call.1} parent=1 // pred_check
      %p102 = pneg %p60
    $region31: #{tpu_custom_call.1} parent=1 // pred_check_branch
      %104 = sbr.rel (%p102) target = $region33
    $region32: #{tpu_custom_call.1} parent=1 // pred_region
      %v105 = vld [vmem:[#allocation2] sm:$0xff]
      %106 = vst [vmem:[#allocation8] sm:$0xff] %v105
    $region33: #{tpu_custom_call.1} parent=1 // pred_fallthru
      _
    // Predicated region
    $region34: #{tpu_custom_call.1} parent=1 // pred_check
      _
    $region35: #{tpu_custom_call.1} parent=1 // pred_check_branch
      %108 = sbr.rel (0) target = $region37
    $region36: #{tpu_custom_call.1} parent=1 // pred_region
      %s110 = ssub.s32 128, 128
      %111 = vsyncadd [#allocation5], %s110
      %s113 = sshll.u32 [#allocation8], 4
      %s114 = int_to_ptr.vmem [resolvable:$true] %s113
      %116 = dma.vmem_to_hbm [thread:$0]  %s114, 128, %s2, [#allocation5]
    $region37: #{tpu_custom_call.1} parent=1 // pred_fallthru
      _
    // Predicated region
    $region38: #{tpu_custom_call.1} parent=1 // pred_check
      _
    $region39: #{tpu_custom_call.1} parent=1 // pred_check_branch
      %118 = sbr.rel (0) target = $region41
    $region40: #{tpu_custom_call.1} parent=1 // pred_region
      %119 = dma.done [#allocation5], 128
    $region41: #{tpu_custom_call.1} parent=1 // pred_fallthru
      _
    %120 = vsyncpa [#allocation4], 1
    %121 = vsyncpa [#allocation7], 1
    %122 = vsyncpa [#allocation5], 1

</llo_original>
